<compile_context>
chip_gen: v7x
topology: tpu7x:2x2x1
jax: 0.10.0
libtpu: 0.0.40
codegen_flags: <defaults>
</compile_context>

<pallas_src>
import math

import jax
import jax.numpy as jnp
from jax.experimental import pallas as pl
from jax.experimental.pallas import tpu as pltpu

# ---------------- small example shapes consistent with the module ----------------
B = 2                      # batch
N = 128                    # tokens  (B*N = 256 rows -> 2 grid steps of 128 rows)
IN_FEATURES = 32           # in_features
HIDDEN = IN_FEATURES * 4   # hidden_features = 128 (lane-dense hidden dim)
OUT_FEATURES = IN_FEATURES # out_features defaults to in_features in the module

TILE_M = 128               # rows per grid step


def _gelu_exact_f32(x):
    # torch.nn.GELU() default = exact erf formulation (kept for parity with the module).
    # TODO(synk): switch to tanh-approx GELU (single EUP push) if bit parity with
    # torch's default GELU is not a hard requirement.
    return 0.5 * x * (1.0 + jax.lax.erf(x * jnp.float32(1.0 / math.sqrt(2.0))))


def mlp_kernel(x_ref, w1_ref, b1_ref, w2_ref, b2_ref, o_ref):
    # x tile arrives f32; cast to bf16 only for the MXU. Weights are already bf16.
    x = x_ref[...].astype(jnp.bfloat16)                                    # (tm, C_in)
    h = jnp.dot(x, w1_ref[...], preferred_element_type=jnp.float32)        # (tm, H) f32
    h = h + b1_ref[...]                                                    # f32 bias bcast
    h = _gelu_exact_f32(h)                                                 # f32 GELU
    # dropout(p=0.0) == identity
    y = jnp.dot(h.astype(jnp.bfloat16), w2_ref[...],
                preferred_element_type=jnp.float32)                        # (tm, C_out) f32
    y = y + b2_ref[...]
    # dropout(p=0.0) == identity
    o_ref[...] = y.astype(o_ref.dtype)


def mlp(x, params, *, tile_m=TILE_M):
    """x: (..., C_in) float32. Row-tiled Pallas Mlp forward."""
    orig_shape = x.shape
    c_in = orig_shape[-1]
    x2d = x.reshape(-1, c_in).astype(jnp.float32)
    m = x2d.shape[0]

    # Pad the row dim so every grid step sees a full (tile_m, C) tile.
    m_pad = pl.cdiv(m, tile_m) * tile_m
    if m_pad != m:
        x2d = jnp.pad(x2d, ((0, m_pad - m), (0, 0)))

    # bf16 weights for the MXU; biases stay f32 for the elementwise tail.
    w1 = params["w_fc1"].astype(jnp.bfloat16)   # (C_in, H)
    b1 = params["b_fc1"].astype(jnp.float32)    # (1, H)
    w2 = params["w_fc2"].astype(jnp.bfloat16)   # (H, C_out)
    b2 = params["b_fc2"].astype(jnp.float32)    # (1, C_out)

    hidden = w1.shape[1]
    c_out = w2.shape[1]
    grid_m = m_pad // tile_m

    cost = pl.CostEstimate(
        flops=2 * m_pad * (c_in * hidden + hidden * c_out),
        transcendentals=m_pad * hidden,  # one erf per hidden activation
        bytes_accessed=(x2d.size * 4 + w1.size * 2 + b1.size * 4
                        + w2.size * 2 + b2.size * 4 + m_pad * c_out * 4),
    )

    out2d = pl.pallas_call(
        mlp_kernel,
        out_shape=jax.ShapeDtypeStruct((m_pad, c_out), jnp.float32),
        grid_spec=pltpu.PrefetchScalarGridSpec(
            num_scalar_prefetch=0,
            grid=(grid_m,),
            in_specs=[
                # Row-tiled activations: double-buffered DMA overlaps compute.
                pl.BlockSpec((tile_m, c_in), lambda i: (i, 0)),
                # Grid-invariant weights/biases: fetched once, VMEM-resident.
                pl.BlockSpec((c_in, hidden), lambda i: (0, 0)),
                pl.BlockSpec((1, hidden), lambda i: (0, 0)),
                pl.BlockSpec((hidden, c_out), lambda i: (0, 0)),
                pl.BlockSpec((1, c_out), lambda i: (0, 0)),
            ],
            out_specs=pl.BlockSpec((tile_m, c_out), lambda i: (i, 0)),
        ),
        compiler_params=pltpu.CompilerParams(
            # Independent row tiles -> shard across both v7x TensorCores.
            dimension_semantics=("parallel",),
        ),
        cost_estimate=cost,
    )(x2d, w1, b1, w2, b2)

    out2d = out2d[:m]
    return out2d.reshape(*orig_shape[:-1], c_out)


def init_params(key):
    ks = jax.random.split(key, 4)
    s = 0.05
    return {
        # Stored (in_features, out_features) so the kernel computes y = x @ W + b.
        "w_fc1": s * jax.random.normal(ks[0], (IN_FEATURES, HIDDEN), jnp.float32),
        "b_fc1": s * jax.random.normal(ks[1], (1, HIDDEN), jnp.float32),
        "w_fc2": s * jax.random.normal(ks[2], (HIDDEN, OUT_FEATURES), jnp.float32),
        "b_fc2": s * jax.random.normal(ks[3], (1, OUT_FEATURES), jnp.float32),
    }


def mlp_ref(x, p):
    """Pure-JAX f32 reference of Mlp.forward (dropout p=0.0 == identity)."""
    h = x @ p["w_fc1"] + p["b_fc1"][0]
    h = 0.5 * h * (1.0 + jax.lax.erf(h / jnp.sqrt(2.0)))
    return h @ p["w_fc2"] + p["b_fc2"][0]


if __name__ == "__main__":
    key = jax.random.PRNGKey(0)
    k_x, k_p = jax.random.split(key, 2)
    x = jax.random.normal(k_x, (B, N, IN_FEATURES), jnp.float32)
    params = init_params(k_p)

    out = mlp(x, params)
    out = jax.block_until_ready(out)

    ref = mlp_ref(x, params)
    assert out.shape == (B, N, OUT_FEATURES)
    # bf16 MXU inputs with f32 accumulation -> loosened tolerance vs the f32 reference.
    assert jnp.allclose(out, ref, atol=2e-2, rtol=2e-2), "mismatch vs reference"

    print("KERNEL_OK")
</pallas_src>

<mosaic_0001>
module attributes {stable_mosaic.version = 11 : i64} {
  func.func @mlp_kernel(%arg0: i32, %arg1: memref<128x32xf32, #tpu.memory_space<vmem>>, %arg2: memref<32x128xbf16, #tpu.memory_space<vmem>>, %arg3: memref<1x128xf32, #tpu.memory_space<vmem>>, %arg4: memref<128x32xbf16, #tpu.memory_space<vmem>>, %arg5: memref<1x32xf32, #tpu.memory_space<vmem>>, %arg6: memref<128x32xf32, #tpu.memory_space<vmem>>) attributes {dimension_semantics = [#tpu.dimension_semantics<parallel>], iteration_bounds = array<i64: 2>, scalar_prefetch = 0 : i64, scratch_operands = 0 : i64, tpu.core_type = #tpu.core_type<tc>, window_params = [{transform_indices = @transform_0, window_bounds = array<i64: 128, 32>}, {pipeline_mode = #tpu.pipeline_mode<synchronous>, transform_indices = @transform_1, window_bounds = array<i64: 32, 128>}, {pipeline_mode = #tpu.pipeline_mode<synchronous>, transform_indices = @transform_2, window_bounds = array<i64: 1, 128>}, {pipeline_mode = #tpu.pipeline_mode<synchronous>, transform_indices = @transform_3, window_bounds = array<i64: 128, 32>}, {pipeline_mode = #tpu.pipeline_mode<synchronous>, transform_indices = @transform_4, window_bounds = array<i64: 1, 32>}, {transform_indices = @transform_5, window_bounds = array<i64: 128, 32>}]} {
    %c0 = arith.constant 0 : index
    %c0_0 = arith.constant 0 : index
    %0 = vector.load %arg1[%c0, %c0_0] : memref<128x32xf32, #tpu.memory_space<vmem>>, vector<128x32xf32>
    %1 = arith.truncf %0 : vector<128x32xf32> to vector<128x32xbf16>
    %c0_1 = arith.constant 0 : index
    %c0_2 = arith.constant 0 : index
    %2 = vector.load %arg2[%c0_1, %c0_2] : memref<32x128xbf16, #tpu.memory_space<vmem>>, vector<32x128xbf16>
    %cst = arith.constant dense<0.000000e+00> : vector<128x128xf32>
    %3 = tpu.matmul %1, %2, %cst {dimension_numbers = #tpu.dot_dimension_numbers<[1], [0], [0], [1], [0, 0, 1, 1], [], []>} : vector<128x32xbf16>, vector<32x128xbf16>, vector<128x128xf32> -> vector<128x128xf32>
    %c0_3 = arith.constant 0 : index
    %c0_4 = arith.constant 0 : index
    %4 = vector.load %arg3[%c0_3, %c0_4] : memref<1x128xf32, #tpu.memory_space<vmem>>, vector<1x128xf32>
    %5 = vector.broadcast %4 : vector<1x128xf32> to vector<128x128xf32>
    %6 = arith.addf %3, %5 : vector<128x128xf32>
    %cst_5 = arith.constant 5.000000e-01 : f32
    %7 = vector.broadcast %cst_5 : f32 to vector<128x128xf32>
    %8 = arith.mulf %7, %6 : vector<128x128xf32>
    %cst_6 = arith.constant 0.707106769 : f32
    %9 = vector.broadcast %cst_6 : f32 to vector<128x128xf32>
    %10 = arith.mulf %6, %9 : vector<128x128xf32>
    %11 = math.erf %10 : vector<128x128xf32>
    %cst_7 = arith.constant 1.000000e+00 : f32
    %12 = vector.broadcast %cst_7 : f32 to vector<128x128xf32>
    %13 = arith.addf %12, %11 : vector<128x128xf32>
    %14 = arith.mulf %8, %13 : vector<128x128xf32>
    %15 = arith.truncf %14 : vector<128x128xf32> to vector<128x128xbf16>
    %c0_8 = arith.constant 0 : index
    %c0_9 = arith.constant 0 : index
    %16 = vector.load %arg4[%c0_8, %c0_9] : memref<128x32xbf16, #tpu.memory_space<vmem>>, vector<128x32xbf16>
    %cst_10 = arith.constant dense<0.000000e+00> : vector<128x32xf32>
    %17 = tpu.matmul %15, %16, %cst_10 {dimension_numbers = #tpu.dot_dimension_numbers<[1], [0], [0], [1], [0, 0, 1, 1], [], []>} : vector<128x128xbf16>, vector<128x32xbf16>, vector<128x32xf32> -> vector<128x32xf32>
    %c0_11 = arith.constant 0 : index
    %c0_12 = arith.constant 0 : index
    %18 = vector.load %arg5[%c0_11, %c0_12] : memref<1x32xf32, #tpu.memory_space<vmem>>, vector<1x32xf32>
    %19 = vector.broadcast %18 : vector<1x32xf32> to vector<128x32xf32>
    %20 = arith.addf %17, %19 : vector<128x32xf32>
    %c0_13 = arith.constant 0 : index
    %c0_14 = arith.constant 0 : index
    %21 = vector.load %arg6[%c0_13, %c0_14] : memref<128x32xf32, #tpu.memory_space<vmem>>, vector<128x32xf32>
    tpu.vector_store %arg6[%c0_13, %c0_14], %20 {strides = array<i32>} : memref<128x32xf32, #tpu.memory_space<vmem>>, vector<128x32xf32>,
    return
  }
  func.func @transform_0(%arg0: i32) -> (i32, i32) {
    %c0_i32 = arith.constant 0 : i32
    %c0_i32_0 = arith.constant 0 : i32
    return %arg0, %c0_i32 : i32, i32
  }
  func.func @transform_1(%arg0: i32) -> (i32, i32) {
    %c0_i32 = arith.constant 0 : i32
    %c0_i32_0 = arith.constant 0 : i32
    %c0_i32_1 = arith.constant 0 : i32
    return %c0_i32, %c0_i32_0 : i32, i32
  }
  func.func @transform_2(%arg0: i32) -> (i32, i32) {
    %c0_i32 = arith.constant 0 : i32
    %c0_i32_0 = arith.constant 0 : i32
    %c0_i32_1 = arith.constant 0 : i32
    return %c0_i32, %c0_i32_0 : i32, i32
  }
  func.func @transform_3(%arg0: i32) -> (i32, i32) {
    %c0_i32 = arith.constant 0 : i32
    %c0_i32_0 = arith.constant 0 : i32
    %c0_i32_1 = arith.constant 0 : i32
    return %c0_i32, %c0_i32_0 : i32, i32
  }
  func.func @transform_4(%arg0: i32) -> (i32, i32) {
    %c0_i32 = arith.constant 0 : i32
    %c0_i32_0 = arith.constant 0 : i32
    %c0_i32_1 = arith.constant 0 : i32
    return %c0_i32, %c0_i32_0 : i32, i32
  }
  func.func @transform_5(%arg0: i32) -> (i32, i32) {
    %c0_i32 = arith.constant 0 : i32
    %c0_i32_0 = arith.constant 0 : i32
    return %arg0, %c0_i32 : i32, i32
  }
}

</mosaic_0001>

<llo_original>
// kernel: tpu_custom_call.1
$region0: #{tpu_custom_call.1}
  #allocation0 [shape = 'u32[]', space=smem, size = 0x4, offset = 0x4, fixed_abs, tag = 'smem constant byte address 0x4 - core index']
  #allocation1 [shape = 'u32[144,128]{1,0:T(1,128)}', space=vmem, size = 0x12000, scoped, tag = 'internal scratch']
  %s0 = inlined_call_operand.vmem [shape: f32[256,32], index: 0, kind: input, shape index: {}]
  %s1 = inlined_call_operand.vmem [shape: bf16[32,128], index: 1, kind: input, shape index: {}]
  %s2 = inlined_call_operand.vmem [shape: f32[1,128], index: 2, kind: input, shape index: {}]
  %s3 = inlined_call_operand.vmem [shape: bf16[128,32], index: 3, kind: input, shape index: {}]
  %s4 = inlined_call_operand.vmem [shape: f32[1,32], index: 4, kind: input, shape index: {}]
  %s5 = inlined_call_operand.vmem [shape: f32[256,32], index: 5, kind: output, shape index: {}]
  %s6 = sld [smem:[#allocation0]]
  $region53: #{tpu_custom_call.1} parent=0
    _
  %s8 = ssub.s32 1, %s6
  %s9 = scalar_select 0, %s8, %s6
  loop: start=0, step=1, limit=4
  $region2: #{tpu_custom_call.1} parent=0 // loop_pre_header
    _
  $region3: #{tpu_custom_call.1} parent=0 // loop_header
    %s11 = sphi 0, %s15
    %p12 = scmp.ge.s32.totalorder %s11, 4
    %s21 = sphi 0, %s23
    %s24 = sphi 0, %s21
    %s25 = sphi 0, %s24
    %s41 = sphi 0, %s25
    %s45 = sphi 0, %s45
    %s47 = sphi 0, %s45
    %s48 = sphi 0, %s47
    %s62 = sphi 0, %s48
    %s66 = sphi 0, %s66
    %s68 = sphi 0, %s66
    %s69 = sphi 0, %s68
    %s83 = sphi 0, %s69
    %s87 = sphi 0, %s87
    %s89 = sphi 0, %s87
    %s90 = sphi 0, %s89
    %s104 = sphi 0, %s90
    %s108 = sphi 0, %s108
    %s110 = sphi 0, %s108
    %s111 = sphi 0, %s110
    %s125 = sphi 0, %s111
    %s131 = sphi 0, %s133
    %s134 = sphi 0, %s131
    %s135 = sphi 0, %s134
    %s151 = sphi 0, %s135
  $region4: #{tpu_custom_call.1} parent=0 // loop_header_branch
    %14 = sbr.rel (%p12) target = $region8
  $region5: #{tpu_custom_call.1} parent=0 // loop_body
    %s16 = ssub.s32 %s11, 1
    %s17 = ssub.s32 %s11, 2
    %s18 = sadd.s32 %s11, 1
    %s19 = ssub.s32 %s11, %s18
    %p20 = scmp.eq.s32.totalorder %s19, 0
    %s22 = sadd.s32 %s21, 1
    %s23 = scalar_select %p20, %s21, %s22
    %p26 = pneg %p20
    %p27 = scmp.eq.s32.totalorder %s11, 1
    %p28 = por %p26, %p27
    %p29 = scmp.ne.s32.totalorder %s21, %s24
    %p30 = scmp.eq.s32.totalorder %s11, 0
    %p31 = por %p29, %p30
    %p32 = scmp.ne.s32.totalorder %s21, %s24
    %p33 = scmp.eq.s32.totalorder %s16, 1
    %p34 = por %p32, %p33
    %p35 = scmp.ne.s32.totalorder %s24, %s25
    %p36 = scmp.eq.s32.totalorder %s16, 0
    %p37 = por %p35, %p36
    %p38 = scmp.ne.s32.totalorder %s24, %s25
    %p39 = scmp.eq.s32.totalorder %s17, 1
    %p40 = por %p38, %p39
    %p42 = scmp.ne.s32.totalorder %s25, %s41
    %p43 = scmp.eq.s32.totalorder %s17, 0
    %p44 = por %p42, %p43
    %s46 = sadd.s32 %s45, 1
    %p49 = scmp.eq.s32.totalorder %s11, 1
    %p50 = scmp.ne.s32.totalorder %s45, %s47
    %p51 = scmp.eq.s32.totalorder %s11, 0
    %p52 = por %p50, %p51
    %p53 = scmp.ne.s32.totalorder %s45, %s47
    %p54 = scmp.eq.s32.totalorder %s16, 1
    %p55 = por %p53, %p54
    %p56 = scmp.ne.s32.totalorder %s47, %s48
    %p57 = scmp.eq.s32.totalorder %s16, 0
    %p58 = por %p56, %p57
    %p59 = scmp.ne.s32.totalorder %s47, %s48
    %p60 = scmp.eq.s32.totalorder %s17, 1
    %p61 = por %p59, %p60
    %p63 = scmp.ne.s32.totalorder %s48, %s62
    %p64 = scmp.eq.s32.totalorder %s17, 0
    %p65 = por %p63, %p64
    %s67 = sadd.s32 %s66, 1
    %p70 = scmp.eq.s32.totalorder %s11, 1
    %p71 = scmp.ne.s32.totalorder %s66, %s68
    %p72 = scmp.eq.s32.totalorder %s11, 0
    %p73 = por %p71, %p72
    %p74 = scmp.ne.s32.totalorder %s66, %s68
    %p75 = scmp.eq.s32.totalorder %s16, 1
    %p76 = por %p74, %p75
    %p77 = scmp.ne.s32.totalorder %s68, %s69
    %p78 = scmp.eq.s32.totalorder %s16, 0
    %p79 = por %p77, %p78
    %p80 = scmp.ne.s32.totalorder %s68, %s69
    %p81 = scmp.eq.s32.totalorder %s17, 1
    %p82 = por %p80, %p81
    %p84 = scmp.ne.s32.totalorder %s69, %s83
    %p85 = scmp.eq.s32.totalorder %s17, 0
    %p86 = por %p84, %p85
    %s88 = sadd.s32 %s87, 1
    %p91 = scmp.eq.s32.totalorder %s11, 1
    %p92 = scmp.ne.s32.totalorder %s87, %s89
    %p93 = scmp.eq.s32.totalorder %s11, 0
    %p94 = por %p92, %p93
    %p95 = scmp.ne.s32.totalorder %s87, %s89
    %p96 = scmp.eq.s32.totalorder %s16, 1
    %p97 = por %p95, %p96
    %p98 = scmp.ne.s32.totalorder %s89, %s90
    %p99 = scmp.eq.s32.totalorder %s16, 0
    %p100 = por %p98, %p99
    %p101 = scmp.ne.s32.totalorder %s89, %s90
    %p102 = scmp.eq.s32.totalorder %s17, 1
    %p103 = por %p101, %p102
    %p105 = scmp.ne.s32.totalorder %s90, %s104
    %p106 = scmp.eq.s32.totalorder %s17, 0
    %p107 = por %p105, %p106
    %s109 = sadd.s32 %s108, 1
    %p112 = scmp.eq.s32.totalorder %s11, 1
    %p113 = scmp.ne.s32.totalorder %s108, %s110
    %p114 = scmp.eq.s32.totalorder %s11, 0
    %p115 = por %p113, %p114
    %p116 = scmp.ne.s32.totalorder %s108, %s110
    %p117 = scmp.eq.s32.totalorder %s16, 1
    %p118 = por %p116, %p117
    %p119 = scmp.ne.s32.totalorder %s110, %s111
    %p120 = scmp.eq.s32.totalorder %s16, 0
    %p121 = por %p119, %p120
    %p122 = scmp.ne.s32.totalorder %s110, %s111
    %p123 = scmp.eq.s32.totalorder %s17, 1
    %p124 = por %p122, %p123
    %p126 = scmp.ne.s32.totalorder %s111, %s125
    %p127 = scmp.eq.s32.totalorder %s17, 0
    %p128 = por %p126, %p127
    %s129 = ssub.s32 %s11, %s18
    %p130 = scmp.eq.s32.totalorder %s129, 0
    %s132 = sadd.s32 %s131, 1
    %s133 = scalar_select %p130, %s131, %s132
    %p136 = pneg %p130
    %p137 = scmp.eq.s32.totalorder %s11, 1
    %p138 = por %p136, %p137
    %p139 = scmp.ne.s32.totalorder %s131, %s134
    %p140 = scmp.eq.s32.totalorder %s11, 0
    %p141 = por %p139, %p140
    %p142 = scmp.ne.s32.totalorder %s131, %s134
    %p143 = scmp.eq.s32.totalorder %s16, 1
    %p144 = por %p142, %p143
    %p145 = scmp.ne.s32.totalorder %s134, %s135
    %p146 = scmp.eq.s32.totalorder %s16, 0
    %p147 = por %p145, %p146
    %p148 = scmp.ne.s32.totalorder %s134, %s135
    %p149 = scmp.eq.s32.totalorder %s17, 1
    %p150 = por %p148, %p149
    %p152 = scmp.ne.s32.totalorder %s135, %s151
    %p153 = scmp.eq.s32.totalorder %s17, 0
    %p154 = por %p152, %p153
    %p155 = scmp.le.s32.totalorder 1, %s11
    %p156 = scmp.lt.s32.totalorder %s11, 3
    %p157 = pnand %p155, %p156
    %p158 = pneg %p157
    // Predicated region
    $region9: #{tpu_custom_call.1} parent=5 // pred_check
      _
    $region10: #{tpu_custom_call.1} parent=5 // pred_check_branch
      %160 = sbr.rel (%p157) target = $region12
    $region11: #{tpu_custom_call.1} parent=5 // pred_region
      %s161 = ssub.s32 %s11, 1
      // Predicated region
      $region13: #{tpu_custom_call.1} parent=11 // pred_check
        %p162 = pneg %p58
      $region14: #{tpu_custom_call.1} parent=11 // pred_check_branch
        %164 = sbr.rel (%p162) target = $region16
      $region15: #{tpu_custom_call.1} parent=11 // pred_region
        _
      $region16: #{tpu_custom_call.1} parent=11 // pred_fallthru
        _
      // Predicated region
      $region17: #{tpu_custom_call.1} parent=11 // pred_check
        %p165 = pneg %p79
      $region18: #{tpu_custom_call.1} parent=11 // pred_check_branch
        %167 = sbr.rel (%p165) target = $region20
      $region19: #{tpu_custom_call.1} parent=11 // pred_region
        _
      $region20: #{tpu_custom_call.1} parent=11 // pred_fallthru
        _
      // Predicated region
      $region21: #{tpu_custom_call.1} parent=11 // pred_check
        %p168 = pneg %p100
      $region22: #{tpu_custom_call.1} parent=11 // pred_check_branch
        %170 = sbr.rel (%p168) target = $region24
      $region23: #{tpu_custom_call.1} parent=11 // pred_region
        _
      $region24: #{tpu_custom_call.1} parent=11 // pred_fallthru
        _
      // Predicated region
      $region25: #{tpu_custom_call.1} parent=11 // pred_check
        %p171 = pneg %p121
      $region26: #{tpu_custom_call.1} parent=11 // pred_check_branch
        %173 = sbr.rel (%p171) target = $region28
      $region27: #{tpu_custom_call.1} parent=11 // pred_region
        _
      $region28: #{tpu_custom_call.1} parent=11 // pred_fallthru
        _
    $region12: #{tpu_custom_call.1} parent=5 // pred_fallthru
      _
    %p174 = scmp.lt.s32.totalorder %s11, 2
    // Predicated region
    $region29: #{tpu_custom_call.1} parent=5 // pred_check
      %p175 = pneg %p174
    $region30: #{tpu_custom_call.1} parent=5 // pred_check_branch
      %177 = sbr.rel (%p175) target = $region32
    $region31: #{tpu_custom_call.1} parent=5 // pred_region
      // Predicated region
      $region33: #{tpu_custom_call.1} parent=31 // pred_check
        %p178 = pneg %p31
      $region34: #{tpu_custom_call.1} parent=31 // pred_check_branch
        %180 = sbr.rel (%p178) target = $region36
      $region35: #{tpu_custom_call.1} parent=31 // pred_region
        %s181 = smul.u32 16, %s11
        %p182 = scmp.lt.s32.totalorder %s181, 31
        %s183 = scalar_select %p182, %s181, 31
        %s184 = smul.addr %s183, 8
        %s185 = scalar_lea.vmem %s0, %s184
        %s186 = smul.u32 16, %s11
      $region36: #{tpu_custom_call.1} parent=31 // pred_fallthru
        _
    $region32: #{tpu_custom_call.1} parent=5 // pred_fallthru
      _
    %p187 = scmp.le.s32.totalorder 1, %s11
    %p188 = scmp.lt.s32.totalorder %s11, 3
    %p189 = pnand %p187, %p188
    %p190 = pneg %p189
    // Predicated region
    $region37: #{tpu_custom_call.1} parent=5 // pred_check
      _
    $region38: #{tpu_custom_call.1} parent=5 // pred_check_branch
      %192 = sbr.rel (%p189) target = $region40
    $region39: #{tpu_custom_call.1} parent=5 // pred_region
      %s193 = ssub.s32 %s11, 1
      %s194 = smul.u32 16, %s16
      %p195 = scmp.lt.s32.totalorder %s194, 31
      %s196 = scalar_select %p195, %s194, 31
      %s197 = smul.addr %s196, 8
      %s198 = scalar_lea.vmem %s0, %s197
      %p199 = pneg %p37
      %p200 = pneg %p34
      %p201 = pneg %p58
      %p202 = pneg %p55
      %p203 = pneg %p79
      %p204 = pneg %p76
      %p205 = pneg %p100
      %p206 = pneg %p97
      %p207 = pneg %p121
      %p208 = pneg %p118
      %p209 = pneg %p147
      %p210 = pneg %p144
      %s211 = smul.u32 16, %s16
      %p212 = scmp.lt.s32.totalorder %s211, 31
      %s213 = scalar_select %p212, %s211, 31
      %s214 = smul.addr %s213, 8
      %s215 = scalar_lea.vmem %s5, %s214
      %s216 = smul.u32 16, %s16
      %p217 = scmp.lt.s32.totalorder %s216, 31
      %s218 = scalar_select %p217, %s216, 31
      %s219 = smul.addr %s218, 8
      %s220 = scalar_lea.vmem %s0, %s219
      %s221 = smul.u32 16, %s16
      %s222 = smul.u32 16, %s16
      %p223 = scmp.lt.s32.totalorder %s222, 31
      %s224 = scalar_select %p223, %s222, 31
      %s225 = smul.addr %s224, 8
      %s226 = scalar_lea.vmem %s5, %s225
      %s227 = smul.u32 16, %s16
      %v229 = vld [vmem:[%s220] sm:$0xff]
      %v230 = vld [vmem:[%s220 + $0x8] sm:$0xff]
      %v231 = vld [vmem:[%s220 + $0x10] sm:$0xff]
      %v232 = vld [vmem:[%s220 + $0x18] sm:$0xff]
      %v233 = vld [vmem:[%s220 + $0x20] sm:$0xff]
      %v234 = vld [vmem:[%s220 + $0x28] sm:$0xff]
      %v235 = vld [vmem:[%s220 + $0x30] sm:$0xff]
      %v236 = vld [vmem:[%s220 + $0x38] sm:$0xff]
      %v237 = vld [vmem:[%s220 + $0x40] sm:$0xff]
      %v238 = vld [vmem:[%s220 + $0x48] sm:$0xff]
      %v239 = vld [vmem:[%s220 + $0x50] sm:$0xff]
      %v240 = vld [vmem:[%s220 + $0x58] sm:$0xff]
      %v241 = vld [vmem:[%s220 + $0x60] sm:$0xff]
      %v242 = vld [vmem:[%s220 + $0x68] sm:$0xff]
      %v243 = vld [vmem:[%s220 + $0x70] sm:$0xff]
      %v244 = vld [vmem:[%s220 + $0x78] sm:$0xff]
      %v245 = vpack.c.bf16 %v230, %v229
      %v246 = vpack.c.bf16 %v232, %v231
      %v247 = vpack.c.bf16 %v234, %v233
      %v248 = vpack.c.bf16 %v236, %v235
      %v249 = vpack.c.bf16 %v238, %v237
      %v250 = vpack.c.bf16 %v240, %v239
      %v251 = vpack.c.bf16 %v242, %v241
      %v252 = vpack.c.bf16 %v244, %v243
      %v253 = vld [vmem:[%s1] sm:$0xf]
      %v254 = vld [vmem:[%s1 + $0x4] sm:$0xf]
      %v255 = vld [vmem:[%s1 + $0x8] sm:$0xf]
      %v256 = vld [vmem:[%s1 + $0xc] sm:$0xf]
      %v257 = vld [vmem:[%s2] sm:$0x1]
      %v259 = vlaneseq
      %v260 = vshrl.u32 %v259, 7
      %v261 = vsub.s32 0, %v260
      %v262 = vrot.slane %v257, %v261
      %v268 = vunpack.c.l.b16 %v253
      %v269 = vunpack.c.l.b16 %v254
      %v270 = vunpack.c.l.b16 %v255
      %v271 = vunpack.c.l.b16 %v256
      %v272 = vpack.c.b16 %v269, %v268
      %v273 = vpack.c.b16 %v271, %v270
      %vm276 = vcmask 261120
      %v278 = vsel %vm276, %v245, 0
      %v281 = vsel %vm276, %v246, 0
      %v284 = vsel %vm276, %v247, 0
      %v287 = vsel %vm276, %v248, 0
      %v290 = vsel %vm276, %v249, 0
      %v293 = vsel %vm276, %v250, 0
      %v296 = vsel %vm276, %v251, 0
      %v299 = vsel %vm276, %v252, 0
      %301 = vmatprep.subr.bf16.mxu0 0
      %302 = vmatpush1.bf16.msra.mxu0 %v272
      %303 = vmatprep.subr.bf16.mxu0 0
      %304 = vmatpush1.bf16.msra.mxu0 %v273
      %305 = vmatprep.subr.bf16.mxu0 0
      %306 = vmatpush1.bf16.msra.mxu0 0
      %307 = vmatprep.subr.bf16.mxu0 0
      %308 = vmatpush1.bf16.msra.mxu0 0
      %309 = vmatprep.subr.bf16.mxu0 0
      %310 = vmatpush1.bf16.msra.mxu0 0
      %311 = vmatprep.subr.bf16.mxu0 0
      %312 = vmatpush1.bf16.msra.mxu0 0
      %313 = vmatprep.subr.bf16.mxu0 0
      %314 = vmatpush1.bf16.msra.mxu0 0
      %315 = vmatprep.subr.bf16.mxu0 0
      %316 = vmatpush1.bf16.msra.mxu0 0
      %317 = vmatprep.subr.bf16.mxu0 0
      %318 = vmatpush1.bf16.msra.mxu0 0
      %319 = vmatprep.subr.bf16.mxu0 0
      %320 = vmatpush1.bf16.msra.mxu0 0
      %321 = vmatprep.subr.bf16.mxu0 0
      %322 = vmatpush1.bf16.msra.mxu0 0
      %323 = vmatprep.subr.bf16.mxu0 0
      %324 = vmatpush1.bf16.msra.mxu0 0
      %325 = vmatprep.subr.bf16.mxu0 0
      %326 = vmatpush1.bf16.msra.mxu0 0
      %327 = vmatprep.subr.bf16.mxu0 0
      %328 = vmatpush1.bf16.msra.mxu0 0
      %329 = vmatprep.subr.bf16.mxu0 0
      %330 = vmatpush1.bf16.msra.mxu0 0
      %331 = vmatprep.subr.bf16.mxu0 0
      %332 = vmatpush1.bf16.msra.mxu0 0
      %333 = vmatprep.mubr.bf16.mxu0 0
      %334 = vmatmul.mubr.bf16.gmra.mrb[0].mxu0 %v278
      %v335 = vpop.f32.mrb[0].mxu0
      %v336 = vadd.f32 %v262, %v335
      %v337 = vpop.f32.mrb[0].mxu0
      %v338 = vpop.f32.mrb[0].mxu0
      %v339 = vadd.f32 %v262, %v338
      %v340 = vpop.f32.mrb[0].mxu0
      %341 = vmatprep.mubr.bf16.mxu0 0
      %342 = vmatmul.mubr.bf16.gmra.mrb[0].mxu0 %v281
      %v343 = vpop.f32.mrb[0].mxu0
      %v344 = vadd.f32 %v262, %v343
      %v345 = vpop.f32.mrb[0].mxu0
      %v346 = vpop.f32.mrb[0].mxu0
      %v347 = vadd.f32 %v262, %v346
      %v348 = vpop.f32.mrb[0].mxu0
      %349 = vmatprep.mubr.bf16.mxu0 0
      %350 = vmatmul.mubr.bf16.gmra.mrb[0].mxu0 %v284
      %v351 = vpop.f32.mrb[0].mxu0
      %v352 = vadd.f32 %v262, %v351
      %v353 = vpop.f32.mrb[0].mxu0
      %v354 = vpop.f32.mrb[0].mxu0
      %v355 = vadd.f32 %v262, %v354
      %v356 = vpop.f32.mrb[0].mxu0
      %357 = vmatprep.mubr.bf16.mxu0 0
      %358 = vmatmul.mubr.bf16.gmra.mrb[0].mxu0 %v287
      %v359 = vpop.f32.mrb[0].mxu0
      %v360 = vadd.f32 %v262, %v359
      %v361 = vpop.f32.mrb[0].mxu0
      %v362 = vpop.f32.mrb[0].mxu0
      %v363 = vadd.f32 %v262, %v362
      %v364 = vpop.f32.mrb[0].mxu0
      %365 = vmatprep.mubr.bf16.mxu0 0
      %366 = vmatmul.mubr.bf16.gmra.mrb[0].mxu0 %v290
      %v367 = vpop.f32.mrb[0].mxu0
      %v368 = vadd.f32 %v262, %v367
      %v369 = vpop.f32.mrb[0].mxu0
      %v370 = vpop.f32.mrb[0].mxu0
      %v371 = vadd.f32 %v262, %v370
      %v372 = vpop.f32.mrb[0].mxu0
      %373 = vmatprep.mubr.bf16.mxu0 0
      %374 = vmatmul.mubr.bf16.gmra.mrb[0].mxu0 %v293
      %v375 = vpop.f32.mrb[0].mxu0
      %v376 = vadd.f32 %v262, %v375
      %v377 = vpop.f32.mrb[0].mxu0
      %v378 = vpop.f32.mrb[0].mxu0
      %v379 = vadd.f32 %v262, %v378
      %v380 = vpop.f32.mrb[0].mxu0
      %381 = vmatprep.mubr.bf16.mxu0 0
      %382 = vmatmul.mubr.bf16.gmra.mrb[0].mxu0 %v296
      %v383 = vpop.f32.mrb[0].mxu0
      %v384 = vadd.f32 %v262, %v383
      %v385 = vpop.f32.mrb[0].mxu0
      %v386 = vpop.f32.mrb[0].mxu0
      %v387 = vadd.f32 %v262, %v386
      %v388 = vpop.f32.mrb[0].mxu0
      %389 = vmatprep.mubr.bf16.mxu0 0
      %390 = vmatmul.mubr.bf16.gmra.mrb[0].mxu0 %v299
      %v391 = vpop.f32.mrb[0].mxu0
      %v392 = vadd.f32 %v262, %v391
      %v393 = vpop.f32.mrb[0].mxu0
      %v394 = vpop.f32.mrb[0].mxu0
      %v395 = vadd.f32 %v262, %v394
      %v396 = vpop.f32.mrb[0].mxu0
      %397 = vdwg.mxu0
      %v398 = vmul.f32 %v336, 0.5
      %v399 = vmul.f32 %v339, 0.5
      %v400 = vmul.f32 %v344, 0.5
      %v401 = vmul.f32 %v347, 0.5
      %v402 = vmul.f32 %v352, 0.5
      %v403 = vmul.f32 %v355, 0.5
      %v404 = vmul.f32 %v360, 0.5
      %v405 = vmul.f32 %v363, 0.5
      %v406 = vmul.f32 %v368, 0.5
      %v407 = vmul.f32 %v371, 0.5
      %v408 = vmul.f32 %v376, 0.5
      %v409 = vmul.f32 %v379, 0.5
      %v410 = vmul.f32 %v384, 0.5
      %v411 = vmul.f32 %v387, 0.5
      %v412 = vmul.f32 %v392, 0.5
      %v413 = vmul.f32 %v395, 0.5
      %v414 = vmul.f32 %v336, 0.70710677
      %v415 = vmul.f32 %v339, 0.70710677
      %v416 = vmul.f32 %v344, 0.70710677
      %v417 = vmul.f32 %v347, 0.70710677
      %v418 = vmul.f32 %v352, 0.70710677
      %v419 = vmul.f32 %v355, 0.70710677
      %v420 = vmul.f32 %v360, 0.70710677
      %v421 = vmul.f32 %v363, 0.70710677
      %v422 = vmul.f32 %v368, 0.70710677
      %v423 = vmul.f32 %v371, 0.70710677
      %v424 = vmul.f32 %v376, 0.70710677
      %v425 = vmul.f32 %v379, 0.70710677
      %v426 = vmul.f32 %v384, 0.70710677
      %v427 = vmul.f32 %v387, 0.70710677
      %v428 = vmul.f32 %v392, 0.70710677
      %v429 = vmul.f32 %v395, 0.70710677
      %v430 = verf.f32.pop %v414
      %v431 = verf.f32.pop %v415
      %v432 = verf.f32.pop %v416
      %v433 = verf.f32.pop %v417
      %v434 = verf.f32.pop %v418
      %v435 = verf.f32.pop %v419
      %v436 = verf.f32.pop %v420
      %v437 = verf.f32.pop %v421
      %v438 = verf.f32.pop %v422
      %v439 = verf.f32.pop %v423
      %v440 = verf.f32.pop %v424
      %v441 = verf.f32.pop %v425
      %v442 = verf.f32.pop %v426
      %v443 = verf.f32.pop %v427
      %v444 = verf.f32.pop %v428
      %v445 = verf.f32.pop %v429
      %v446 = vadd.f32 %v430, 1.0
      %v447 = vadd.f32 %v431, 1.0
      %v448 = vadd.f32 %v432, 1.0
      %v449 = vadd.f32 %v433, 1.0
      %v450 = vadd.f32 %v434, 1.0
      %v451 = vadd.f32 %v435, 1.0
      %v452 = vadd.f32 %v436, 1.0
      %v453 = vadd.f32 %v437, 1.0
      %v454 = vadd.f32 %v438, 1.0
      %v455 = vadd.f32 %v439, 1.0
      %v456 = vadd.f32 %v440, 1.0
      %v457 = vadd.f32 %v441, 1.0
      %v458 = vadd.f32 %v442, 1.0
      %v459 = vadd.f32 %v443, 1.0
      %v460 = vadd.f32 %v444, 1.0
      %v461 = vadd.f32 %v445, 1.0
      %v462 = vmul.f32 %v398, %v446
      %v463 = vmul.f32 %v399, %v447
      %v464 = vmul.f32 %v400, %v448
      %v465 = vmul.f32 %v401, %v449
      %v466 = vmul.f32 %v402, %v450
      %v467 = vmul.f32 %v403, %v451
      %v468 = vmul.f32 %v404, %v452
      %v469 = vmul.f32 %v405, %v453
      %v470 = vmul.f32 %v406, %v454
      %v471 = vmul.f32 %v407, %v455
      %v472 = vmul.f32 %v408, %v456
      %v473 = vmul.f32 %v409, %v457
      %v474 = vmul.f32 %v410, %v458
      %v475 = vmul.f32 %v411, %v459
      %v476 = vmul.f32 %v412, %v460
      %v477 = vmul.f32 %v413, %v461
      %v478 = vpack.c.bf16 %v463, %v462
      %v479 = vpack.c.bf16 %v465, %v464
      %v480 = vpack.c.bf16 %v467, %v466
      %v481 = vpack.c.bf16 %v469, %v468
      %v482 = vpack.c.bf16 %v471, %v470
      %v483 = vpack.c.bf16 %v473, %v472
      %v484 = vpack.c.bf16 %v475, %v474
      %v485 = vpack.c.bf16 %v477, %v476
      %v486 = vld [vmem:[%s3] sm:$0xf]
      %v487 = vld [vmem:[%s3 + $0x4] sm:$0xf]
      %v488 = vld [vmem:[%s3 + $0x8] sm:$0xf]
      %v489 = vld [vmem:[%s3 + $0xc] sm:$0xf]
      %v490 = vld [vmem:[%s3 + $0x10] sm:$0xf]
      %v491 = vld [vmem:[%s3 + $0x14] sm:$0xf]
      %v492 = vld [vmem:[%s3 + $0x18] sm:$0xf]
      %v493 = vld [vmem:[%s3 + $0x1c] sm:$0xf]
      %v494 = vld [vmem:[%s3 + $0x20] sm:$0xf]
      %v495 = vld [vmem:[%s3 + $0x24] sm:$0xf]
      %v496 = vld [vmem:[%s3 + $0x28] sm:$0xf]
      %v497 = vld [vmem:[%s3 + $0x2c] sm:$0xf]
      %v498 = vld [vmem:[%s3 + $0x30] sm:$0xf]
      %v499 = vld [vmem:[%s3 + $0x34] sm:$0xf]
      %v500 = vld [vmem:[%s3 + $0x38] sm:$0xf]
      %v501 = vld [vmem:[%s3 + $0x3c] sm:$0xf]
      %v502 = vld [vmem:[%s4] sm:$0x1]
      %v504 = vlaneseq
      %v505 = vshrl.u32 %v504, 7
      %v506 = vsub.s32 0, %v505
      %v507 = vrot.slane %v502, %v506
      %v525 = vunpack.c.l.b16 %v486
      %v526 = vunpack.c.l.b16 %v487
      %v527 = vunpack.c.l.b16 %v488
      %v528 = vunpack.c.l.b16 %v489
      %v529 = vunpack.c.l.b16 %v490
      %v530 = vunpack.c.l.b16 %v491
      %v531 = vunpack.c.l.b16 %v492
      %v532 = vunpack.c.l.b16 %v493
      %v533 = vunpack.c.l.b16 %v494
      %v534 = vunpack.c.l.b16 %v495
      %v535 = vunpack.c.l.b16 %v496
      %v536 = vunpack.c.l.b16 %v497
      %v537 = vunpack.c.l.b16 %v498
      %v538 = vunpack.c.l.b16 %v499
      %v539 = vunpack.c.l.b16 %v500
      %v540 = vunpack.c.l.b16 %v501
      %v541 = vpack.c.b16 %v526, %v525
      %v542 = vpack.c.b16 %v528, %v527
      %v543 = vpack.c.b16 %v530, %v529
      %v544 = vpack.c.b16 %v532, %v531
      %v545 = vpack.c.b16 %v534, %v533
      %v546 = vpack.c.b16 %v536, %v535
      %v547 = vpack.c.b16 %v538, %v537
      %v548 = vpack.c.b16 %v540, %v539
      %557 = vmatprep.subr.bf16.mxu0 0
      %558 = vmatpush1.bf16.msra.mxu0 %v541
      %559 = vmatprep.subr.bf16.mxu0 0
      %560 = vmatpush1.bf16.msra.mxu0 %v542
      %561 = vmatprep.subr.bf16.mxu0 0
      %562 = vmatpush1.bf16.msra.mxu0 %v543
      %563 = vmatprep.subr.bf16.mxu0 0
      %564 = vmatpush1.bf16.msra.mxu0 %v544
      %565 = vmatprep.subr.bf16.mxu0 0
      %566 = vmatpush1.bf16.msra.mxu0 %v545
      %567 = vmatprep.subr.bf16.mxu0 0
      %568 = vmatpush1.bf16.msra.mxu0 %v546
      %569 = vmatprep.subr.bf16.mxu0 0
      %570 = vmatpush1.bf16.msra.mxu0 %v547
      %571 = vmatprep.subr.bf16.mxu0 0
      %572 = vmatpush1.bf16.msra.mxu0 %v548
      %573 = vmatprep.subr.bf16.mxu0 0
      %574 = vmatpush1.bf16.msra.mxu0 0
      %575 = vmatprep.subr.bf16.mxu0 0
      %576 = vmatpush1.bf16.msra.mxu0 0
      %577 = vmatprep.subr.bf16.mxu0 0
      %578 = vmatpush1.bf16.msra.mxu0 0
      %579 = vmatprep.subr.bf16.mxu0 0
      %580 = vmatpush1.bf16.msra.mxu0 0
      %581 = vmatprep.subr.bf16.mxu0 0
      %582 = vmatpush1.bf16.msra.mxu0 0
      %583 = vmatprep.subr.bf16.mxu0 0
      %584 = vmatpush1.bf16.msra.mxu0 0
      %585 = vmatprep.subr.bf16.mxu0 0
      %586 = vmatpush1.bf16.msra.mxu0 0
      %587 = vmatprep.subr.bf16.mxu0 0
      %588 = vmatpush1.bf16.msra.mxu0 0
      %589 = vmatprep.mubr.bf16.mxu0 0
      %590 = vmatmul.mubr.bf16.gmra.mrb[0].mxu0 %v478
      %v591 = vpop.f32.mrb[0].mxu0
      %v592 = vadd.f32 %v507, %v591
      %v593 = vpop.f32.mrb[0].mxu0
      %v594 = vpop.f32.mrb[0].mxu0
      %v595 = vadd.f32 %v507, %v594
      %v596 = vpop.f32.mrb[0].mxu0
      %597 = vmatprep.mubr.bf16.mxu0 0
      %598 = vmatmul.mubr.bf16.gmra.mrb[0].mxu0 %v479
      %v599 = vpop.f32.mrb[0].mxu0
      %v600 = vadd.f32 %v507, %v599
      %v601 = vpop.f32.mrb[0].mxu0
      %v602 = vpop.f32.mrb[0].mxu0
      %v603 = vadd.f32 %v507, %v602
      %v604 = vpop.f32.mrb[0].mxu0
      %605 = vmatprep.mubr.bf16.mxu0 0
      %606 = vmatmul.mubr.bf16.gmra.mrb[0].mxu0 %v480
      %v607 = vpop.f32.mrb[0].mxu0
      %v608 = vadd.f32 %v507, %v607
      %v609 = vpop.f32.mrb[0].mxu0
      %v610 = vpop.f32.mrb[0].mxu0
      %v611 = vadd.f32 %v507, %v610
      %v612 = vpop.f32.mrb[0].mxu0
      %613 = vmatprep.mubr.bf16.mxu0 0
      %614 = vmatmul.mubr.bf16.gmra.mrb[0].mxu0 %v481
      %v615 = vpop.f32.mrb[0].mxu0
      %v616 = vadd.f32 %v507, %v615
      %v617 = vpop.f32.mrb[0].mxu0
      %v618 = vpop.f32.mrb[0].mxu0
      %v619 = vadd.f32 %v507, %v618
      %v620 = vpop.f32.mrb[0].mxu0
      %621 = vmatprep.mubr.bf16.mxu0 0
      %622 = vmatmul.mubr.bf16.gmra.mrb[0].mxu0 %v482
      %v623 = vpop.f32.mrb[0].mxu0
      %v624 = vadd.f32 %v507, %v623
      %v625 = vpop.f32.mrb[0].mxu0
      %v626 = vpop.f32.mrb[0].mxu0
      %v627 = vadd.f32 %v507, %v626
      %v628 = vpop.f32.mrb[0].mxu0
      %629 = vmatprep.mubr.bf16.mxu0 0
      %630 = vmatmul.mubr.bf16.gmra.mrb[0].mxu0 %v483
      %v631 = vpop.f32.mrb[0].mxu0
      %v632 = vadd.f32 %v507, %v631
      %v633 = vpop.f32.mrb[0].mxu0
      %v634 = vpop.f32.mrb[0].mxu0
      %v635 = vadd.f32 %v507, %v634
      %v636 = vpop.f32.mrb[0].mxu0
      %637 = vmatprep.mubr.bf16.mxu0 0
      %638 = vmatmul.mubr.bf16.gmra.mrb[0].mxu0 %v484
      %v639 = vpop.f32.mrb[0].mxu0
      %v640 = vadd.f32 %v507, %v639
      %v641 = vpop.f32.mrb[0].mxu0
      %v642 = vpop.f32.mrb[0].mxu0
      %v643 = vadd.f32 %v507, %v642
      %v644 = vpop.f32.mrb[0].mxu0
      %645 = vmatprep.mubr.bf16.mxu0 0
      %646 = vmatmul.mubr.bf16.gmra.mrb[0].mxu0 %v485
      %v647 = vpop.f32.mrb[0].mxu0
      %v648 = vadd.f32 %v507, %v647
      %v649 = vpop.f32.mrb[0].mxu0
      %v650 = vpop.f32.mrb[0].mxu0
      %v651 = vadd.f32 %v507, %v650
      %v652 = vpop.f32.mrb[0].mxu0
      %653 = vdwg.mxu0
      %654 = vst.msk [vmem:[%s226] sm:$0xff] %vm276, %v592
      %655 = vst.msk [vmem:[%s226 + $0x8] sm:$0xff] %vm276, %v595
      %656 = vst.msk [vmem:[%s226 + $0x10] sm:$0xff] %vm276, %v600
      %657 = vst.msk [vmem:[%s226 + $0x18] sm:$0xff] %vm276, %v603
      %658 = vst.msk [vmem:[%s226 + $0x20] sm:$0xff] %vm276, %v608
      %659 = vst.msk [vmem:[%s226 + $0x28] sm:$0xff] %vm276, %v611
      %660 = vst.msk [vmem:[%s226 + $0x30] sm:$0xff] %vm276, %v616
      %661 = vst.msk [vmem:[%s226 + $0x38] sm:$0xff] %vm276, %v619
      %662 = vst.msk [vmem:[%s226 + $0x40] sm:$0xff] %vm276, %v624
      %663 = vst.msk [vmem:[%s226 + $0x48] sm:$0xff] %vm276, %v627
      %664 = vst.msk [vmem:[%s226 + $0x50] sm:$0xff] %vm276, %v632
      %665 = vst.msk [vmem:[%s226 + $0x58] sm:$0xff] %vm276, %v635
      %666 = vst.msk [vmem:[%s226 + $0x60] sm:$0xff] %vm276, %v640
      %667 = vst.msk [vmem:[%s226 + $0x68] sm:$0xff] %vm276, %v643
      %668 = vst.msk [vmem:[%s226 + $0x70] sm:$0xff] %vm276, %v648
      %669 = vst.msk [vmem:[%s226 + $0x78] sm:$0xff] %vm276, %v651
      %s670 = smul.u32 16, %s16
      %p671 = scmp.lt.s32.totalorder %s670, 31
      %s672 = scalar_select %p671, %s670, 31
      %s673 = smul.addr %s672, 8
      %s674 = scalar_lea.vmem %s5, %s673
      // Predicated region
      $region41: #{tpu_custom_call.1} parent=39 // pred_check
        %p675 = pneg %p144
      $region42: #{tpu_custom_call.1} parent=39 // pred_check_branch
        %677 = sbr.rel (%p675) target = $region44
      $region43: #{tpu_custom_call.1} parent=39 // pred_region
        %s678 = smul.u32 16, %s16
      $region44: #{tpu_custom_call.1} parent=39 // pred_fallthru
        _
    $region40: #{tpu_custom_call.1} parent=5 // pred_fallthru
      _
    %p679 = scmp.le.s32.totalorder 2, %s11
    // Predicated region
    $region45: #{tpu_custom_call.1} parent=5 // pred_check
      %p680 = pneg %p679
    $region46: #{tpu_custom_call.1} parent=5 // pred_check_branch
      %682 = sbr.rel (%p680) target = $region48
    $region47: #{tpu_custom_call.1} parent=5 // pred_region
      %s683 = ssub.s32 %s11, 2
      // Predicated region
      $region49: #{tpu_custom_call.1} parent=47 // pred_check
        %p684 = pneg %p150
      $region50: #{tpu_custom_call.1} parent=47 // pred_check_branch
        %686 = sbr.rel (%p684) target = $region52
      $region51: #{tpu_custom_call.1} parent=47 // pred_region
        %s687 = smul.u32 16, %s17
        %p688 = scmp.lt.s32.totalorder %s687, 31
        %s689 = scalar_select %p688, %s687, 31
        %s690 = smul.addr %s689, 8
        %s691 = scalar_lea.vmem %s5, %s690
      $region52: #{tpu_custom_call.1} parent=47 // pred_fallthru
        _
    $region48: #{tpu_custom_call.1} parent=5 // pred_fallthru
      _
  $region6: #{tpu_custom_call.1} parent=0 // loop_footer
    %s15 = sadd.s32 1, %s11
  $region7: #{tpu_custom_call.1} parent=0 // loop_footer_branch
    %10 = sbr.rel target = $region3
  $region8: #{tpu_custom_call.1} parent=0 // loop_exit
    _

</llo_original>
